<compile_context>
chip_gen: v5e
topology: v5e:2x2
jax: 0.10.0
libtpu: 0.0.40
codegen_flags: <defaults>
</compile_context>

<pallas_src>
import functools

import jax
import jax.numpy as jnp
import numpy as np
from jax.experimental import pallas as pl
from jax.experimental.pallas import tpu as pltpu


def _round_up(x, m):
    return (x + m - 1) // m * m


def seqattn_kernel(seq_ref, mask_ref, wt_ref, b_ref, ctx_ref, out_ref,
                   *, l_orig, matmul_dtype):
    bb, lp, e = seq_ref.shape
    ep = out_ref.shape[-1]

    # fc + tanh: one (Bb*Lp, E) x (E, Ep) MXU matmul for the whole block.
    # Operands are cast to matmul_dtype in VMEM (bf16 on request); the
    # accumulation is always f32.
    x2 = seq_ref[...].reshape(bb * lp, e).astype(matmul_dtype)
    h = jnp.tanh(
        jnp.dot(x2, wt_ref[...], preferred_element_type=jnp.float32)
        + b_ref[...]
    )                                       # (Bb*Lp, Ep) f32
    h3 = h.reshape(bb, lp, ep)              # free split: lp is a multiple of 8

    mask = mask_ref[...]                    # (Bb, Lp) f32, 1.0 where l < lens[b]

    # Attention scores with L on the lane axis.  PyTorch zeroes h at masked
    # timesteps, which makes their score exactly 0 -> multiply by the mask.
    scores = jnp.sum(h3 * ctx_ref[...], axis=-1) * mask       # (Bb, Lp)

    # Timesteps that exist only because of L-padding must not enter softmax.
    if lp > l_orig:
        pos = jax.lax.broadcasted_iota(jnp.int32, (bb, lp), 1)
        scores = jnp.where(pos < l_orig, scores, -1e30)

    # Softmax over L (dense lane reductions).  Masked-but-real timesteps keep
    # their exp(0 - m) mass, matching the PyTorch module exactly.
    m = jnp.max(scores, axis=-1, keepdims=True)                # (Bb, 1)
    ex = jnp.exp(scores - m)
    denom = jnp.sum(ex, axis=-1, keepdims=True)
    wts = (ex / denom) * mask               # fold the h-mask into the weights

    # Probability-weighted sum: out[b, e] = sum_l wts[b, l] * h[b, l, e].
    if lp <= 64:
        # Short unrolled VPU broadcast-accumulate: avoids Bb separate M=1
        # matmuls on the MXU and any lane<->sublane relayout of the weights.
        acc = h3[:, 0, :] * wts[:, 0:1]
        for l in range(1, lp):
            acc = acc + h3[:, l, :] * wts[:, l:l + 1]
        out_ref[...] = acc
    else:
        # Long sequences: amortize on the MXU (proven lowering path).
        out_ref[...] = jnp.einsum(
            "bql,ble->bqe", wts.reshape(bb, 1, lp), h3,
            preferred_element_type=jnp.float32).reshape(bb, ep)


def _choose_block_b(B, Lp, E, Ep, seq_itemsize, mat_itemsize):
    """Per-grid-step batch block. Prefers (a) no batch padding, (b) ~512 MXU M
    rows per step, (c) a ~12 MiB VMEM working set (double-buffered seq tile +
    f32 h + outputs, accounting for the double-buffered W^T), and (d) >= 2
    grid steps for B >= 16 so both v7x TensorCores get work."""
    row_bytes = (2 * Lp * E * seq_itemsize   # double-buffered sequence tile
                 + 2 * Lp * Ep * 4           # f32 h + one same-size temp
                 + 2 * Lp * 4                # mask
                 + 2 * Ep * 4)               # double-buffered output row
    const_bytes = 2 * E * Ep * mat_itemsize + 4 * Ep * 4
    budget = max(row_bytes, (12 << 20) - const_bytes)
    cap_vmem = budget // row_bytes
    cap_mxu = (512 + Lp - 1) // Lp           # ~512 MXU M rows per step
    cap = int(max(1, min(cap_vmem, cap_mxu)))
    if B <= cap:
        if B >= 16 and B % 16 == 0 and B // 2 <= cap:
            return B // 2                    # >=2 parallel steps (v7x 2 TCs)
        return B                             # single block, no batch padding
    cap = max(8, cap // 8 * 8)               # sublane rule for mask/out blocks
    for bb in range(cap, 7, -8):             # prefer a divisor of B: no pad
        if B % bb == 0:
            return bb
    return cap                               # rare fall-through: pad the batch


def seq_attn(sequence, lens, w, bias, context, *, block_b=None,
             matmul_dtype=None):
    """sequence: (B, L, E); lens: (B,) int; w: (E, E); bias: (E,);
    context: (E, 1) or (E,).  Returns (B, E) in sequence.dtype.
    matmul_dtype=jnp.bfloat16 runs the fc matmul on the bf16 MXU path
    (f32 accumulate); the default keeps full f32 numerics."""
    B, L, E = sequence.shape
    Lp = _round_up(L, 8)
    Ep = _round_up(E, 128)
    if matmul_dtype is None:
        matmul_dtype = (jnp.bfloat16 if sequence.dtype == jnp.bfloat16
                        else jnp.float32)

    if block_b is None:
        block_b = _choose_block_b(B, Lp, E, Ep,
                                  np.dtype(sequence.dtype).itemsize,
                                  np.dtype(matmul_dtype).itemsize)
    Bp = _round_up(B, block_b)

    # Only materialise pads that are strictly required (each wrapper-side pad
    # is an extra HBM round trip over the sequence stream).  E is never padded.
    seq_p = sequence
    if Bp != B or Lp != L:
        seq_p = jnp.pad(sequence, ((0, Bp - B), (0, Lp - L), (0, 0)))

    mask = (jnp.arange(Lp, dtype=jnp.int32)[None, :]
            < lens.astype(jnp.int32)[:, None]).astype(jnp.float32)
    if Bp != B:
        mask = jnp.pad(mask, ((0, Bp - B), (0, 0)))

    # Constant operands: pad only their N side to Ep (zero columns -> padded
    # lanes of h are exactly 0, so scores and outputs are unaffected).
    wt = w.T.astype(matmul_dtype)
    b_v = bias.astype(jnp.float32)
    ctx_v = context.reshape(-1).astype(jnp.float32)
    if Ep != E:
        wt = jnp.pad(wt, ((0, 0), (0, Ep - E)))
        b_v = jnp.pad(b_v, (0, Ep - E))
        ctx_v = jnp.pad(ctx_v, (0, Ep - E))
    b_v = b_v.reshape(1, Ep)
    ctx_v = ctx_v.reshape(1, Ep)

    kernel = functools.partial(seqattn_kernel, l_orig=L,
                               matmul_dtype=matmul_dtype)

    out = pl.pallas_call(
        kernel,
        out_shape=jax.ShapeDtypeStruct((Bp, Ep), jnp.float32),
        grid_spec=pltpu.PrefetchScalarGridSpec(
            num_scalar_prefetch=0,
            grid=(Bp // block_b,),
            in_specs=[
                # Sequence keeps its true E (full-dim last axis): one
                # contiguous DMA per block, no padded lanes read from HBM.
                pl.BlockSpec((block_b, Lp, E), lambda i: (i, 0, 0)),
                pl.BlockSpec((block_b, Lp), lambda i: (i, 0)),     # length mask
                pl.BlockSpec((E, Ep), lambda i: (0, 0)),           # W^T (N-padded)
                pl.BlockSpec((1, Ep), lambda i: (0, 0)),           # bias
                pl.BlockSpec((1, Ep), lambda i: (0, 0)),           # context
            ],
            out_specs=pl.BlockSpec((block_b, Ep), lambda i: (i, 0)),
        ),
        compiler_params=pltpu.CompilerParams(
            dimension_semantics=("parallel",),
            vmem_limit_bytes=48 * 1024 * 1024,
        ),
    )(seq_p, mask, wt, b_v, ctx_v)
    return out[:B, :E].astype(sequence.dtype)


def seq_attn_ref(sequence, lens, w, bias, context):
    """Pure-JAX reference mirroring the PyTorch forward exactly."""
    B, L, E = sequence.shape
    mask = (jnp.arange(L)[None, :] < lens[:, None]).astype(jnp.float32)
    h = jnp.tanh(sequence.reshape(-1, E) @ w.T + bias).reshape(B, L, E)
    h = h * mask[:, :, None]
    scores = jnp.einsum("ble,e->bl", h, context.reshape(-1))
    probs = jax.nn.softmax(scores, axis=1)[:, :, None]
    return jnp.sum(h * probs, axis=1)


if __name__ == "__main__":
    key = jax.random.PRNGKey(0)
    E = 32
    k_seq, k_w, k_b, k_ctx, k_seq2, k_seq3, k_len3 = jax.random.split(key, 7)
    bound = 1.0 / np.sqrt(E)
    w = jax.random.uniform(k_w, (E, E), jnp.float32, -bound, bound)
    bias = jax.random.uniform(k_b, (E,), jnp.float32, -bound, bound)
    context = jax.random.uniform(k_ctx, (E, 1), jnp.float32, 0.0, 1.0)

    # Case 1: aligned shapes (B=2, L=8), single grid step, full f32.
    sequence = jax.random.normal(k_seq, (2, 8, E), dtype=jnp.float32)
    lens = jnp.array([5, 8], dtype=jnp.int32)
    out = jax.block_until_ready(seq_attn(sequence, lens, w, bias, context))
    ref = jax.block_until_ready(seq_attn_ref(sequence, lens, w, bias, context))
    np.testing.assert_allclose(np.asarray(out), np.asarray(ref),
                               rtol=1e-5, atol=1e-5)

    # Case 2: ragged B and L (B=5, L=7) -> exercises the L-padding path.
    sequence2 = jax.random.normal(k_seq2, (5, 7, E), dtype=jnp.float32)
    lens2 = jnp.array([3, 7, 1, 5, 2], dtype=jnp.int32)
    out2 = jax.block_until_ready(seq_attn(sequence2, lens2, w, bias, context))
    ref2 = jax.block_until_ready(seq_attn_ref(sequence2, lens2, w, bias, context))
    np.testing.assert_allclose(np.asarray(out2), np.asarray(ref2),
                               rtol=1e-5, atol=1e-5)

    # Case 3: larger batch (B=32, L=12) -> 2 grid steps of 16 rows, L padded.
    sequence3 = jax.random.normal(k_seq3, (32, 12, E), dtype=jnp.float32)
    lens3 = jax.random.randint(k_len3, (32,), 1, 13).astype(jnp.int32)
    out3 = jax.block_until_ready(seq_attn(sequence3, lens3, w, bias, context))
    ref3 = jax.block_until_ready(seq_attn_ref(sequence3, lens3, w, bias, context))
    np.testing.assert_allclose(np.asarray(out3), np.asarray(ref3),
                               rtol=1e-5, atol=1e-5)

    # Case 4: bf16 MXU path (f32 accumulate) — looser tolerance.
    out4 = jax.block_until_ready(
        seq_attn(sequence, lens, w, bias, context, matmul_dtype=jnp.bfloat16))
    np.testing.assert_allclose(np.asarray(out4), np.asarray(ref),
                               rtol=5e-2, atol=5e-2)

    print("KERNEL_OK")
</pallas_src>

<mosaic_0001>
module attributes {stable_mosaic.version = 11 : i64} {
  func.func @seqattn_kernel(%arg0: i32, %arg1: memref<2x8x32xf32, #tpu.memory_space<vmem>>, %arg2: memref<2x8xf32, #tpu.memory_space<vmem>>, %arg3: memref<32x128xf32, #tpu.memory_space<vmem>>, %arg4: memref<1x128xf32, #tpu.memory_space<vmem>>, %arg5: memref<1x128xf32, #tpu.memory_space<vmem>>, %arg6: memref<2x128xf32, #tpu.memory_space<vmem>>) attributes {dimension_semantics = [#tpu.dimension_semantics<parallel>], iteration_bounds = array<i64: 1>, scalar_prefetch = 0 : i64, scratch_operands = 0 : i64, tpu.core_type = #tpu.core_type<tc>, window_params = [{transform_indices = @transform_0, window_bounds = array<i64: 2, 8, 32>}, {transform_indices = @transform_1, window_bounds = array<i64: 2, 8>}, {pipeline_mode = #tpu.pipeline_mode<synchronous>, transform_indices = @transform_2, window_bounds = array<i64: 32, 128>}, {pipeline_mode = #tpu.pipeline_mode<synchronous>, transform_indices = @transform_3, window_bounds = array<i64: 1, 128>}, {pipeline_mode = #tpu.pipeline_mode<synchronous>, transform_indices = @transform_4, window_bounds = array<i64: 1, 128>}, {transform_indices = @transform_5, window_bounds = array<i64: 2, 128>}]} {
    %c0 = arith.constant 0 : index
    %c0_0 = arith.constant 0 : index
    %c0_1 = arith.constant 0 : index
    %0 = vector.load %arg1[%c0, %c0_0, %c0_1] : memref<2x8x32xf32, #tpu.memory_space<vmem>>, vector<2x8x32xf32>
    %1 = vector.shape_cast %0 : vector<2x8x32xf32> to vector<16x32xf32>
    %c0_2 = arith.constant 0 : index
    %c0_3 = arith.constant 0 : index
    %2 = vector.load %arg3[%c0_2, %c0_3] : memref<32x128xf32, #tpu.memory_space<vmem>>, vector<32x128xf32>
    %cst = arith.constant dense<0.000000e+00> : vector<16x128xf32>
    %3 = tpu.matmul %1, %2, %cst {dimension_numbers = #tpu.dot_dimension_numbers<[1], [0], [0], [1], [0, 0, 1, 1], [], []>} : vector<16x32xf32>, vector<32x128xf32>, vector<16x128xf32> -> vector<16x128xf32>
    %c0_4 = arith.constant 0 : index
    %c0_5 = arith.constant 0 : index
    %4 = vector.load %arg4[%c0_4, %c0_5] : memref<1x128xf32, #tpu.memory_space<vmem>>, vector<1x128xf32>
    %5 = vector.broadcast %4 : vector<1x128xf32> to vector<16x128xf32>
    %6 = arith.addf %3, %5 : vector<16x128xf32>
    %7 = math.tanh %6 : vector<16x128xf32>
    %8 = vector.shape_cast %7 : vector<16x128xf32> to vector<2x8x128xf32>
    %c0_6 = arith.constant 0 : index
    %c0_7 = arith.constant 0 : index
    %9 = vector.load %arg2[%c0_6, %c0_7] : memref<2x8xf32, #tpu.memory_space<vmem>>, vector<2x8xf32>
    %c0_8 = arith.constant 0 : index
    %c0_9 = arith.constant 0 : index
    %10 = vector.load %arg5[%c0_8, %c0_9] : memref<1x128xf32, #tpu.memory_space<vmem>>, vector<1x128xf32>
    %11 = vector.shape_cast %10 : vector<1x128xf32> to vector<1x1x128xf32>
    %12 = vector.broadcast %11 : vector<1x1x128xf32> to vector<2x8x128xf32>
    %13 = arith.mulf %8, %12 : vector<2x8x128xf32>
    %cst_10 = arith.constant dense<0.000000e+00> : vector<2x8xf32>
    %14 = vector.multi_reduction <add>, %13, %cst_10 [2] : vector<2x8x128xf32> to vector<2x8xf32>
    %15 = arith.mulf %14, %9 : vector<2x8xf32>
    %cst_11 = arith.constant dense<0xFF800000> : vector<2xf32>
    %16 = vector.multi_reduction <maximumf>, %15, %cst_11 [1] : vector<2x8xf32> to vector<2xf32>
    %17 = vector.shape_cast %16 : vector<2xf32> to vector<2x1xf32>
    %18 = vector.broadcast %17 : vector<2x1xf32> to vector<2x8xf32>
    %19 = arith.subf %15, %18 : vector<2x8xf32>
    %20 = math.exp %19 : vector<2x8xf32>
    %cst_12 = arith.constant dense<0.000000e+00> : vector<2xf32>
    %21 = vector.multi_reduction <add>, %20, %cst_12 [1] : vector<2x8xf32> to vector<2xf32>
    %22 = vector.shape_cast %21 : vector<2xf32> to vector<2x1xf32>
    %23 = vector.broadcast %22 : vector<2x1xf32> to vector<2x8xf32>
    %24 = arith.divf %20, %23 : vector<2x8xf32>
    %25 = arith.mulf %24, %9 : vector<2x8xf32>
    %26 = vector.extract_strided_slice %8 {offsets = [0, 0, 0], sizes = [2, 1, 128], strides = [1, 1, 1]} : vector<2x8x128xf32> to vector<2x1x128xf32>
    %27 = vector.shape_cast %26 : vector<2x1x128xf32> to vector<2x128xf32>
    %28 = vector.extract_strided_slice %25 {offsets = [0, 0], sizes = [2, 1], strides = [1, 1]} : vector<2x8xf32> to vector<2x1xf32>
    %29 = vector.broadcast %28 : vector<2x1xf32> to vector<2x128xf32>
    %30 = arith.mulf %27, %29 : vector<2x128xf32>
    %31 = vector.extract_strided_slice %8 {offsets = [0, 1, 0], sizes = [2, 1, 128], strides = [1, 1, 1]} : vector<2x8x128xf32> to vector<2x1x128xf32>
    %32 = vector.shape_cast %31 : vector<2x1x128xf32> to vector<2x128xf32>
    %33 = vector.extract_strided_slice %25 {offsets = [0, 1], sizes = [2, 1], strides = [1, 1]} : vector<2x8xf32> to vector<2x1xf32>
    %34 = vector.broadcast %33 : vector<2x1xf32> to vector<2x128xf32>
    %35 = arith.mulf %32, %34 : vector<2x128xf32>
    %36 = arith.addf %30, %35 : vector<2x128xf32>
    %37 = vector.extract_strided_slice %8 {offsets = [0, 2, 0], sizes = [2, 1, 128], strides = [1, 1, 1]} : vector<2x8x128xf32> to vector<2x1x128xf32>
    %38 = vector.shape_cast %37 : vector<2x1x128xf32> to vector<2x128xf32>
    %39 = vector.extract_strided_slice %25 {offsets = [0, 2], sizes = [2, 1], strides = [1, 1]} : vector<2x8xf32> to vector<2x1xf32>
    %40 = vector.broadcast %39 : vector<2x1xf32> to vector<2x128xf32>
    %41 = arith.mulf %38, %40 : vector<2x128xf32>
    %42 = arith.addf %36, %41 : vector<2x128xf32>
    %43 = vector.extract_strided_slice %8 {offsets = [0, 3, 0], sizes = [2, 1, 128], strides = [1, 1, 1]} : vector<2x8x128xf32> to vector<2x1x128xf32>
    %44 = vector.shape_cast %43 : vector<2x1x128xf32> to vector<2x128xf32>
    %45 = vector.extract_strided_slice %25 {offsets = [0, 3], sizes = [2, 1], strides = [1, 1]} : vector<2x8xf32> to vector<2x1xf32>
    %46 = vector.broadcast %45 : vector<2x1xf32> to vector<2x128xf32>
    %47 = arith.mulf %44, %46 : vector<2x128xf32>
    %48 = arith.addf %42, %47 : vector<2x128xf32>
    %49 = vector.extract_strided_slice %8 {offsets = [0, 4, 0], sizes = [2, 1, 128], strides = [1, 1, 1]} : vector<2x8x128xf32> to vector<2x1x128xf32>
    %50 = vector.shape_cast %49 : vector<2x1x128xf32> to vector<2x128xf32>
    %51 = vector.extract_strided_slice %25 {offsets = [0, 4], sizes = [2, 1], strides = [1, 1]} : vector<2x8xf32> to vector<2x1xf32>
    %52 = vector.broadcast %51 : vector<2x1xf32> to vector<2x128xf32>
    %53 = arith.mulf %50, %52 : vector<2x128xf32>
    %54 = arith.addf %48, %53 : vector<2x128xf32>
    %55 = vector.extract_strided_slice %8 {offsets = [0, 5, 0], sizes = [2, 1, 128], strides = [1, 1, 1]} : vector<2x8x128xf32> to vector<2x1x128xf32>
    %56 = vector.shape_cast %55 : vector<2x1x128xf32> to vector<2x128xf32>
    %57 = vector.extract_strided_slice %25 {offsets = [0, 5], sizes = [2, 1], strides = [1, 1]} : vector<2x8xf32> to vector<2x1xf32>
    %58 = vector.broadcast %57 : vector<2x1xf32> to vector<2x128xf32>
    %59 = arith.mulf %56, %58 : vector<2x128xf32>
    %60 = arith.addf %54, %59 : vector<2x128xf32>
    %61 = vector.extract_strided_slice %8 {offsets = [0, 6, 0], sizes = [2, 1, 128], strides = [1, 1, 1]} : vector<2x8x128xf32> to vector<2x1x128xf32>
    %62 = vector.shape_cast %61 : vector<2x1x128xf32> to vector<2x128xf32>
    %63 = vector.extract_strided_slice %25 {offsets = [0, 6], sizes = [2, 1], strides = [1, 1]} : vector<2x8xf32> to vector<2x1xf32>
    %64 = vector.broadcast %63 : vector<2x1xf32> to vector<2x128xf32>
    %65 = arith.mulf %62, %64 : vector<2x128xf32>
    %66 = arith.addf %60, %65 : vector<2x128xf32>
    %67 = vector.extract_strided_slice %8 {offsets = [0, 7, 0], sizes = [2, 1, 128], strides = [1, 1, 1]} : vector<2x8x128xf32> to vector<2x1x128xf32>
    %68 = vector.shape_cast %67 : vector<2x1x128xf32> to vector<2x128xf32>
    %69 = vector.extract_strided_slice %25 {offsets = [0, 7], sizes = [2, 1], strides = [1, 1]} : vector<2x8xf32> to vector<2x1xf32>
    %70 = vector.broadcast %69 : vector<2x1xf32> to vector<2x128xf32>
    %71 = arith.mulf %68, %70 : vector<2x128xf32>
    %72 = arith.addf %66, %71 : vector<2x128xf32>
    %c0_13 = arith.constant 0 : index
    %c0_14 = arith.constant 0 : index
    %73 = vector.load %arg6[%c0_13, %c0_14] : memref<2x128xf32, #tpu.memory_space<vmem>>, vector<2x128xf32>
    tpu.vector_store %arg6[%c0_13, %c0_14], %72 {strides = array<i32>} : memref<2x128xf32, #tpu.memory_space<vmem>>, vector<2x128xf32>,
    return
  }
  func.func @transform_0(%arg0: i32) -> (i32, i32, i32) {
    %c0_i32 = arith.constant 0 : i32
    %c0_i32_0 = arith.constant 0 : i32
    %c0_i32_1 = arith.constant 0 : i32
    return %arg0, %c0_i32, %c0_i32_0 : i32, i32, i32
  }
  func.func @transform_1(%arg0: i32) -> (i32, i32) {
    %c0_i32 = arith.constant 0 : i32
    %c0_i32_0 = arith.constant 0 : i32
    return %arg0, %c0_i32 : i32, i32
  }
  func.func @transform_2(%arg0: i32) -> (i32, i32) {
    %c0_i32 = arith.constant 0 : i32
    %c0_i32_0 = arith.constant 0 : i32
    %c0_i32_1 = arith.constant 0 : i32
    return %c0_i32, %c0_i32_0 : i32, i32
  }
  func.func @transform_3(%arg0: i32) -> (i32, i32) {
    %c0_i32 = arith.constant 0 : i32
    %c0_i32_0 = arith.constant 0 : i32
    %c0_i32_1 = arith.constant 0 : i32
    return %c0_i32, %c0_i32_0 : i32, i32
  }
  func.func @transform_4(%arg0: i32) -> (i32, i32) {
    %c0_i32 = arith.constant 0 : i32
    %c0_i32_0 = arith.constant 0 : i32
    %c0_i32_1 = arith.constant 0 : i32
    return %c0_i32, %c0_i32_0 : i32, i32
  }
  func.func @transform_5(%arg0: i32) -> (i32, i32) {
    %c0_i32 = arith.constant 0 : i32
    %c0_i32_0 = arith.constant 0 : i32
    return %arg0, %c0_i32 : i32, i32
  }
}

</mosaic_0001>

<llo_original>
// kernel: tpu_custom_call.1
$region0: #{tpu_custom_call.1}
  #allocation0 [shape = 'u32[]', space=smem, size = 0x4, offset = 0x4, fixed_abs, tag = 'smem constant byte address 0x4 - core index']
  #allocation1 [shape = 'u32[72,128]{1,0:T(1,128)}', space=vmem, size = 0x9000, scoped, tag = 'internal scratch']
  %s0 = inlined_call_operand.hbm [shape: f32[2,8,32], index: 0, kind: input, shape index: {}]
  %s1 = inlined_call_operand.hbm [shape: f32[2,8], index: 1, kind: input, shape index: {}]
  %s2 = inlined_call_operand.hbm [shape: f32[32,128], index: 2, kind: input, shape index: {}]
  %s3 = inlined_call_operand.vmem [shape: f32[1,128], index: 3, kind: input, shape index: {}]
  %s4 = inlined_call_operand.vmem [shape: f32[1,128], index: 4, kind: input, shape index: {}]
  %s5 = inlined_call_operand.hbm [shape: f32[2,128], index: 5, kind: output, shape index: {}]
  %s6 = sld [smem:[#allocation0]]
  $region42: #{tpu_custom_call.1} parent=0
    _
  %s8 = ssub.s32 1, %s6
  %s9 = scalar_select 0, %s8, %s6
  $region1: #{tpu_custom_call.1} parent=0
    #allocation2 [shape = 'u8[8192]{0}', space=vmem, size = 0x2000, scoped, tag = 'input window, operand 0, single buffered']
    #allocation3 [shape = 's32[1]{0}', space=sflag, size = 0x4, scoped, tag = 'scoped memory for tpu_custom_call.1']
    #allocation4 [shape = 's32[1]{0}', space=sflag, size = 0x4, scoped, tag = 'scoped memory for tpu_custom_call.1']
    #allocation5 [shape = 'u8[1024]{0}', space=vmem, size = 0x400, scoped, tag = 'input window, operand 1, single buffered']
    #allocation6 [shape = 's32[1]{0}', space=sflag, size = 0x4, scoped, tag = 'scoped memory for tpu_custom_call.1']
    #allocation7 [shape = 'u8[16384]{0}', space=vmem, size = 0x4000, scoped, tag = 'input window, operand 2, single buffered']
    #allocation8 [shape = 'u8[1024]{0}', space=vmem, size = 0x400, scoped, tag = 'output window, operand 0, single buffered']
    %10 = vsyncpa [#allocation3], 0
    %11 = vsyncpa [#allocation6], 0
    %12 = vsyncpa [#allocation4], 0
    // Predicated region
    $region2: #{tpu_custom_call.1} parent=1 // pred_check
      _
    $region3: #{tpu_custom_call.1} parent=1 // pred_check_branch
      %14 = sbr.rel (0) target = $region5
    $region4: #{tpu_custom_call.1} parent=1 // pred_region
      %16 = vsyncadd [#allocation3], 0
      %s17 = sshll.u32 %s0, 4
      %s18 = int_to_ptr.hbm [resolvable:$true] %s17
      %s19 = sshll.u32 [#allocation2], 4
      %s20 = int_to_ptr.vmem [resolvable:$true] %s19
      %25 = dma.hbm_to_vmem [thread:$0]  %s18, 256, %s20, [#allocation3], 128, 128, 8
    $region5: #{tpu_custom_call.1} parent=1 // pred_fallthru
      _
    // Predicated region
    $region6: #{tpu_custom_call.1} parent=1 // pred_check
      _
    $region7: #{tpu_custom_call.1} parent=1 // pred_check_branch
      %27 = sbr.rel (0) target = $region9
    $region8: #{tpu_custom_call.1} parent=1 // pred_region
      %29 = vsyncadd [#allocation6], 0
      %s31 = sshll.u32 %s1, 4
      %s32 = int_to_ptr.hbm [resolvable:$true] %s31
      %s33 = sshll.u32 [#allocation5], 4
      %s34 = int_to_ptr.vmem [resolvable:$true] %s33
      %36 = dma.hbm_to_vmem [thread:$0]  %s32, 32, %s34, [#allocation6]
    $region9: #{tpu_custom_call.1} parent=1 // pred_fallthru
      _
    // Predicated region
    $region10: #{tpu_custom_call.1} parent=1 // pred_check
      _
    $region11: #{tpu_custom_call.1} parent=1 // pred_check_branch
      %38 = sbr.rel (0) target = $region13
    $region12: #{tpu_custom_call.1} parent=1 // pred_region
      %40 = vsyncadd [#allocation6], 0
      %s41 = sshll.u32 %s2, 4
      %s42 = int_to_ptr.hbm [resolvable:$true] %s41
      %s43 = sshll.u32 [#allocation7], 4
      %s44 = int_to_ptr.vmem [resolvable:$true] %s43
      %49 = dma.hbm_to_vmem [thread:$0]  %s42, 512, %s44, [#allocation6], 128, 128, 8
    $region13: #{tpu_custom_call.1} parent=1 // pred_fallthru
      _
    // Predicated region
    $region14: #{tpu_custom_call.1} parent=1 // pred_check
      _
    $region15: #{tpu_custom_call.1} parent=1 // pred_check_branch
      %51 = sbr.rel (0) target = $region17
    $region16: #{tpu_custom_call.1} parent=1 // pred_region
      _
    $region17: #{tpu_custom_call.1} parent=1 // pred_fallthru
      _
    // Predicated region
    $region18: #{tpu_custom_call.1} parent=1 // pred_check
      _
    $region19: #{tpu_custom_call.1} parent=1 // pred_check_branch
      %53 = sbr.rel (0) target = $region21
    $region20: #{tpu_custom_call.1} parent=1 // pred_region
      _
    $region21: #{tpu_custom_call.1} parent=1 // pred_fallthru
      _
    // Predicated region
    $region22: #{tpu_custom_call.1} parent=1 // pred_check
      _
    $region23: #{tpu_custom_call.1} parent=1 // pred_check_branch
      %55 = sbr.rel (0) target = $region25
    $region24: #{tpu_custom_call.1} parent=1 // pred_region
      %57 = dma.done [#allocation3], 256
    $region25: #{tpu_custom_call.1} parent=1 // pred_fallthru
      _
    // Predicated region
    $region26: #{tpu_custom_call.1} parent=1 // pred_check
      _
    $region27: #{tpu_custom_call.1} parent=1 // pred_check_branch
      %59 = sbr.rel (0) target = $region29
    $region28: #{tpu_custom_call.1} parent=1 // pred_region
      %61 = dma.done [#allocation6], 32
    $region29: #{tpu_custom_call.1} parent=1 // pred_fallthru
      _
    // Predicated region
    $region30: #{tpu_custom_call.1} parent=1 // pred_check
      _
    $region31: #{tpu_custom_call.1} parent=1 // pred_check_branch
      %63 = sbr.rel (0) target = $region33
    $region32: #{tpu_custom_call.1} parent=1 // pred_region
      %65 = dma.done [#allocation6], 512
    $region33: #{tpu_custom_call.1} parent=1 // pred_fallthru
      _
    %v66 = vld [vmem:[#allocation2] sm:$0xff]
    %v67 = vld [vmem:[#allocation2 + $0x8] sm:$0xff]
    %v68 = vld [vmem:[#allocation7] sm:$0xff]
    %v69 = vld [vmem:[#allocation7 + $0x8] sm:$0xff]
    %v70 = vld [vmem:[#allocation7 + $0x10] sm:$0xff]
    %v71 = vld [vmem:[#allocation7 + $0x18] sm:$0xff]
    %v72 = vld [vmem:[%s3] sm:$0x1]
    %v74 = vperm.slane %v72, 0
    %vm76 = vcmask 261120
    %v78 = vsel %vm76, %v66, 0
    %v81 = vsel %vm76, %v67, 0
    %83 = vmatpush.msra.mxu0 0.0
    %84 = vmatpush.msra.mxu0 0.0
    %85 = vmatpush.msra.mxu0 0.0
    %86 = vmatpush.msra.mxu0 0.0
    %87 = vmatpush.msra.mxu0 0.0
    %88 = vmatpush.msra.mxu0 0.0
    %89 = vmatpush.msra.mxu0 0.0
    %90 = vmatpush.msra.mxu0 0.0
    %91 = vmatpush.msra.mxu0 0.0
    %92 = vmatpush.msra.mxu0 0.0
    %93 = vmatpush.msra.mxu0 0.0
    %94 = vmatpush.msra.mxu0 0.0
    %95 = vmatpush.msra.mxu0 %v71
    %96 = vmatpush.msra.mxu0 %v70
    %97 = vmatpush.msra.mxu0 %v69
    %98 = vmatpush.msra.mxu0 %v68
    %99 = vmatmul.f32.gmra.mxu0 %v78
    %v100 = vpop.f32.mrf.mxu0
    %v101 = vadd.f32 %v74, %v100
    %102 = vmatmul.f32.gmra.mxu0 %v81
    %v103 = vpop.f32.mrf.mxu0
    %v104 = vadd.f32 %v74, %v103
    %105 = vdwg.mxu0
    %v106 = vtanh.pop %v101
    %v107 = vtanh.pop %v104
    %v108 = vld [vmem:[#allocation5] sm:$0x3]
    %v109 = vld [vmem:[%s4] sm:$0x1]
    %v111 = vperm.slane %v109, 0
    %v113 = vmul.f32 %v106, %v111
    %v114 = vmul.f32 %v107, %v111
    %115 = vadd.xlane.f32.xlu0 %v113
    %v116 = vpop.xlane.xlu0 %115
    %117 = vadd.xlane.f32.xlu0 %v114
    %v118 = vpop.xlane.xlu0 %117
    %v120 = vperm.slane %v108, 0
    %v121 = vlaneseq
    %v122 = vshrl.u32 %v121, 7
    %124 = vset.pattern.permute.xlu0 %v122
    %125 = vperm.xlu0 %124, %v120
    %v126 = vpop.permute.xlu0 %125
    %v127 = vperm.slane %v108, 1
    %v128 = vlaneseq
    %v129 = vshrl.u32 %v128, 7
    %131 = vset.pattern.permute.xlu0 %v129
    %132 = vperm.xlu0 %131, %v127
    %v133 = vpop.permute.xlu0 %132
    %v136 = vmul.f32 %v116, %v126
    %v137 = vmul.f32 %v118, %v133
    %140 = vset.pattern.permute.xlu0 0
    %141 = vperm.xlu0 %140, %v136
    %v142 = vpop.permute.xlu0 %141
    %143 = vset.pattern.permute.xlu0 0
    %144 = vperm.xlu0 %143, %v137
    %v145 = vpop.permute.xlu0 %144
    %v146 = vlaneseq
    %v147 = vand.u32 %v146, 127
    %v148 = vperm.slane %v142, %v147
    %v149 = vperm.slane %v145, %v147
    %vm150 = vcmask 1041409
    %v151 = vsel %vm150, %v149, %v148
    %vm153 = vcmask 58368
    %v154 = vsel %vm153, %v151, -inf
    %155 = vmax.xlane.f32.xlu0 %v154
    %v156 = vpop.xlane.xlu0 %155
    %v158 = vperm.slane %v156, 0
    %v159 = vperm.slane %v156, 1
    %v162 = vsub.f32 %v136, %v158
    %v163 = vsub.f32 %v137, %v159
    %v164 = vmul.f32 %v162, 1.442695
    %v165 = vpow.pop %v164
    %v166 = vmul.f32 %v163, 1.442695
    %v167 = vpow.pop %v166
    %170 = vset.pattern.permute.xlu0 0
    %171 = vperm.xlu0 %170, %v165
    %v172 = vpop.permute.xlu0 %171
    %173 = vset.pattern.permute.xlu0 0
    %174 = vperm.xlu0 %173, %v167
    %v175 = vpop.permute.xlu0 %174
    %v176 = vperm.slane %v172, %v147
    %v177 = vperm.slane %v175, %v147
    %v178 = vsel %vm150, %v177, %v176
    %v180 = vsel %vm153, %v178, 0.0
    %181 = vadd.xlane.f32.xlu0 %v180
    %v182 = vpop.xlane.xlu0 %181
    %v184 = vperm.slane %v182, 0
    %v185 = vperm.slane %v182, 1
    %v188 = vrcp.pop %v184
    %v189 = vmul.f32 %v184, %v188
    %v190 = vsub.f32 1.0, %v189
    %v191 = vmul.f32 %v188, %v190
    %v192 = vadd.f32 %v188, %v191
    %vm193 = vweird.f32 %v184
    %vm194 = vweird.f32 %v188
    %vm195 = vmor %vm193, %vm194
    %v196 = vsel %vm195, %v188, %v192
    %v197 = vand.u32 2147483647, %v184
    %vm198 = vcmp.eq.f32.partialorder %v197, 8.507059e+37
    %v199 = vand.u32 %v184, 2147483648
    %v200 = vor.u32 1.1754944e-38, %v199
    %v201 = vsel %vm198, %v200, %v196
    %v202 = vmul.f32 %v165, %v201
    %v203 = vrcp.pop %v185
    %v204 = vmul.f32 %v185, %v203
    %v205 = vsub.f32 1.0, %v204
    %v206 = vmul.f32 %v203, %v205
    %v207 = vadd.f32 %v203, %v206
    %vm208 = vweird.f32 %v185
    %vm209 = vweird.f32 %v203
    %vm210 = vmor %vm208, %vm209
    %v211 = vsel %vm210, %v203, %v207
    %v212 = vand.u32 2147483647, %v185
    %vm213 = vcmp.eq.f32.partialorder %v212, 8.507059e+37
    %v214 = vand.u32 %v185, 2147483648
    %v215 = vor.u32 1.1754944e-38, %v214
    %v216 = vsel %vm213, %v215, %v211
    %v217 = vmul.f32 %v167, %v216
    %v218 = vmul.f32 %v202, %v126
    %v219 = vmul.f32 %v217, %v133
    %v220 = vperm.slane %v218, 0
    %v221 = vperm.slane %v219, 0
    %224 = vset.pattern.permute.xlu0 0
    %225 = vperm.xlu0 %224, %v220
    %v226 = vpop.permute.xlu0 %225
    %227 = vset.pattern.permute.xlu0 0
    %228 = vperm.xlu0 %227, %v221
    %v229 = vpop.permute.xlu0 %228
    %v232 = vmul.f32 %v106, %v226
    %v233 = vmul.f32 %v107, %v229
    %v234 = vperm.slane %v218, 1
    %v235 = vperm.slane %v219, 1
    %238 = vset.pattern.permute.xlu0 0
    %239 = vperm.xlu0 %238, %v234
    %v240 = vpop.permute.xlu0 %239
    %241 = vset.pattern.permute.xlu0 0
    %242 = vperm.xlu0 %241, %v235
    %v243 = vpop.permute.xlu0 %242
    %v246 = vmul.f32 %v106, %v240
    %v247 = vmul.f32 %v107, %v243
    %v250 = vrot.slane %v246, 1
    %v251 = vrot.slane %v247, 1
    %v254 = vadd.f32 %v232, %v250
    %v255 = vadd.f32 %v233, %v251
    %v256 = vperm.slane %v218, 2
    %v257 = vperm.slane %v219, 2
    %260 = vset.pattern.permute.xlu0 0
    %261 = vperm.xlu0 %260, %v256
    %v262 = vpop.permute.xlu0 %261
    %263 = vset.pattern.permute.xlu0 0
    %264 = vperm.xlu0 %263, %v257
    %v265 = vpop.permute.xlu0 %264
    %v268 = vmul.f32 %v106, %v262
    %v269 = vmul.f32 %v107, %v265
    %v272 = vrot.slane %v268, 2
    %v273 = vrot.slane %v269, 2
    %v276 = vadd.f32 %v254, %v272
    %v277 = vadd.f32 %v255, %v273
    %v278 = vperm.slane %v218, 3
    %v279 = vperm.slane %v219, 3
    %282 = vset.pattern.permute.xlu0 0
    %283 = vperm.xlu0 %282, %v278
    %v284 = vpop.permute.xlu0 %283
    %285 = vset.pattern.permute.xlu0 0
    %286 = vperm.xlu0 %285, %v279
    %v287 = vpop.permute.xlu0 %286
    %v290 = vmul.f32 %v106, %v284
    %v291 = vmul.f32 %v107, %v287
    %v294 = vrot.slane %v290, 3
    %v295 = vrot.slane %v291, 3
    %v298 = vadd.f32 %v276, %v294
    %v299 = vadd.f32 %v277, %v295
    %v300 = vperm.slane %v218, 4
    %v301 = vperm.slane %v219, 4
    %304 = vset.pattern.permute.xlu0 0
    %305 = vperm.xlu0 %304, %v300
    %v306 = vpop.permute.xlu0 %305
    %307 = vset.pattern.permute.xlu0 0
    %308 = vperm.xlu0 %307, %v301
    %v309 = vpop.permute.xlu0 %308
    %v312 = vmul.f32 %v106, %v306
    %v313 = vmul.f32 %v107, %v309
    %v316 = vrot.slane %v312, 4
    %v317 = vrot.slane %v313, 4
    %v320 = vadd.f32 %v298, %v316
    %v321 = vadd.f32 %v299, %v317
    %v322 = vperm.slane %v218, 5
    %v323 = vperm.slane %v219, 5
    %326 = vset.pattern.permute.xlu0 0
    %327 = vperm.xlu0 %326, %v322
    %v328 = vpop.permute.xlu0 %327
    %329 = vset.pattern.permute.xlu0 0
    %330 = vperm.xlu0 %329, %v323
    %v331 = vpop.permute.xlu0 %330
    %v334 = vmul.f32 %v106, %v328
    %v335 = vmul.f32 %v107, %v331
    %v338 = vrot.slane %v334, 5
    %v339 = vrot.slane %v335, 5
    %v342 = vadd.f32 %v320, %v338
    %v343 = vadd.f32 %v321, %v339
    %v344 = vperm.slane %v218, 6
    %v345 = vperm.slane %v219, 6
    %348 = vset.pattern.permute.xlu0 0
    %349 = vperm.xlu0 %348, %v344
    %v350 = vpop.permute.xlu0 %349
    %351 = vset.pattern.permute.xlu0 0
    %352 = vperm.xlu0 %351, %v345
    %v353 = vpop.permute.xlu0 %352
    %v356 = vmul.f32 %v106, %v350
    %v357 = vmul.f32 %v107, %v353
    %v360 = vrot.slane %v356, 6
    %v361 = vrot.slane %v357, 6
    %v364 = vadd.f32 %v342, %v360
    %v365 = vadd.f32 %v343, %v361
    %v366 = vperm.slane %v218, 7
    %v367 = vperm.slane %v219, 7
    %370 = vset.pattern.permute.xlu0 0
    %371 = vperm.xlu0 %370, %v366
    %v372 = vpop.permute.xlu0 %371
    %373 = vset.pattern.permute.xlu0 0
    %374 = vperm.xlu0 %373, %v367
    %v375 = vpop.permute.xlu0 %374
    %v378 = vmul.f32 %v106, %v372
    %v379 = vmul.f32 %v107, %v375
    %v382 = vrot.slane %v378, 7
    %v383 = vrot.slane %v379, 7
    %v386 = vadd.f32 %v364, %v382
    %v387 = vadd.f32 %v365, %v383
    %v390 = vrot.slane %v387, 7
    %v391 = vsel %vm150, %v390, %v386
    %393 = vst [vmem:[#allocation8] sm:$0x3] %v391
    // Predicated region
    $region34: #{tpu_custom_call.1} parent=1 // pred_check
      _
    $region35: #{tpu_custom_call.1} parent=1 // pred_check_branch
      %395 = sbr.rel (0) target = $region37
    $region36: #{tpu_custom_call.1} parent=1 // pred_region
      %397 = vsyncadd [#allocation4], 0
      %s399 = sshll.u32 [#allocation8], 4
      %s400 = int_to_ptr.vmem [resolvable:$true] %s399
      %s401 = sshll.u32 %s5, 4
      %s402 = int_to_ptr.hbm [resolvable:$true] %s401
      %404 = dma.vmem_to_hbm [thread:$0]  %s400, 32, %s402, [#allocation4]
    $region37: #{tpu_custom_call.1} parent=1 // pred_fallthru
      _
    // Predicated region
    $region38: #{tpu_custom_call.1} parent=1 // pred_check
      _
    $region39: #{tpu_custom_call.1} parent=1 // pred_check_branch
      %406 = sbr.rel (0) target = $region41
    $region40: #{tpu_custom_call.1} parent=1 // pred_region
      %408 = dma.done [#allocation4], 32
    $region41: #{tpu_custom_call.1} parent=1 // pred_fallthru
      _
    %409 = vsyncpa [#allocation3], 1
    %410 = vsyncpa [#allocation6], 1
    %411 = vsyncpa [#allocation4], 1

</llo_original>
